<compile_context>
chip_gen: v5e
topology: v5e:2x2
jax: 0.10.0
libtpu: 0.0.40
codegen_flags: <defaults>
</compile_context>

<pallas_src>
import jax
import jax.numpy as jnp
from jax.experimental import pallas as pl
from jax.experimental.pallas import tpu as pltpu


def seqpool_kernel(x_ref, w_ref, o_ref, m_sc, l_sc, acc_sc):
    # x_ref: (Bt, St, E) VMEM, w_ref: (1, E) VMEM, o_ref: (Bt, 1, E) VMEM
    # m_sc/l_sc: (Bt, 1, 1) f32 scratch, acc_sc: (Bt, 1, E) f32 scratch
    si = pl.program_id(1)

    @pl.when(si == 0)
    def _init():
        m_sc[...] = jnp.full(m_sc.shape, -jnp.inf, jnp.float32)
        l_sc[...] = jnp.zeros(l_sc.shape, jnp.float32)
        acc_sc[...] = jnp.zeros(acc_sc.shape, jnp.float32)

    x = x_ref[...].astype(jnp.float32)                       # (Bt, St, E)
    bt, _, e = x.shape
    w = w_ref[...].astype(jnp.float32)                       # (1, E)
    q = jnp.broadcast_to(w[None, :, :], (bt, 1, e))          # (Bt, 1, E)

    # Logits, lane-dense on the sequence axis; MXU contraction over E.
    s = jnp.einsum("bqe,bse->bqs", q, x,
                   preferred_element_type=jnp.float32)        # (Bt, 1, St)

    # Online softmax update (running max / denom / unnormalized weighted sum).
    m_prev = m_sc[...]                                        # (Bt, 1, 1)
    m_new = jnp.maximum(m_prev, s.max(axis=-1, keepdims=True))
    alpha = jnp.exp(m_prev - m_new)                           # (Bt, 1, 1)
    p = jnp.exp(s - m_new)                                    # (Bt, 1, St), unnormalized
    l_sc[...] = alpha * l_sc[...] + p.sum(axis=-1, keepdims=True)
    # Weighted (unnormalized) sum on the MXU: (Bt,1,St)@(Bt,St,E) -> (Bt,1,E).
    acc_sc[...] = alpha * acc_sc[...] + jnp.einsum(
        "bqs,bse->bqe", p, x, preferred_element_type=jnp.float32)
    m_sc[...] = m_new

    @pl.when(si == pl.num_programs(1) - 1)
    def _finalize():
        inv = pl.reciprocal(l_sc[...], approx=False)          # (Bt, 1, 1)
        o_ref[...] = (acc_sc[...] * inv).astype(o_ref.dtype)


def _pick_batch_tile(b):
    for cand in (8, 4, 2, 1):
        if b % cand == 0:
            return cand
    return 1


def _pick_seq_tile(s, bt, e, itemsize, budget_bytes=4 * 1024 * 1024):
    # Largest tile that divides S, is sublane-aligned, and keeps one x block
    # <= ~4 MiB so the double-buffered pipeline fits v5e's 16 MiB scoped VMEM
    # (and leaves ample headroom on v6e/v7x).
    for cand in (4096, 2048, 1024, 512, 256, 128, 64, 32, 16, 8):
        if cand <= s and s % cand == 0 and bt * cand * e * itemsize <= budget_bytes:
            return cand
    return s


def seq_pool(x, w, b=None, *, bt=None, st=None):
    """SeqPool forward.

    x: (B, S, E); w: (1, E) torch-layout Linear(E, 1).weight; b: Linear bias,
    unused inside the kernel (softmax is invariant to a scalar shift of the
    scores), kept for API parity with the PyTorch module. Returns (B, E).
    """
    del b  # softmax shift-invariance: the scalar bias cannot affect the output
    B, S, E = x.shape
    if bt is None:
        bt = _pick_batch_tile(B)
    if st is None:
        st = _pick_seq_tile(S, bt, E, x.dtype.itemsize)
    assert B % bt == 0 and S % st == 0, "tile sizes must divide (B, S)"

    out = pl.pallas_call(
        seqpool_kernel,
        out_shape=jax.ShapeDtypeStruct((B, 1, E), x.dtype),
        grid_spec=pltpu.PrefetchScalarGridSpec(
            num_scalar_prefetch=0,
            grid=(B // bt, S // st),
            in_specs=[
                pl.BlockSpec((bt, st, E), lambda bi, si: (bi, si, 0)),
                pl.BlockSpec((1, E), lambda bi, si: (0, 0)),
            ],
            out_specs=pl.BlockSpec((bt, 1, E), lambda bi, si: (bi, 0, 0)),
            scratch_shapes=[
                pltpu.VMEM((bt, 1, 1), jnp.float32),   # running max
                pltpu.VMEM((bt, 1, 1), jnp.float32),   # running softmax denom
                pltpu.VMEM((bt, 1, E), jnp.float32),   # unnormalized weighted sum
            ],
        ),
        compiler_params=pltpu.CompilerParams(
            dimension_semantics=("parallel", "arbitrary")),
    )(x, w)
    # The module's final `.reshape(bs, emb_dim)`, done outside the kernel so the
    # in-kernel stores keep the natural (Bt, 1, E) attention-output layout.
    return out.reshape(B, E)


def seq_pool_ref(x, w, b):
    """Pure-JAX reference matching the PyTorch module exactly (bias included)."""
    scores = jnp.einsum("bse,oe->bso", x, w) + b              # (B, S, 1)
    attn = jax.nn.softmax(jnp.swapaxes(scores, 1, 2), -1)     # (B, 1, S)
    return jnp.einsum("bos,bse->boe", attn, x)[:, 0, :]       # (B, E)


if __name__ == "__main__":
    key = jax.random.PRNGKey(0)
    kx, kw, kb, kx2 = jax.random.split(key, 4)

    # Small shapes consistent with the module: batch=2, seq=8, emb_dim=32.
    B, S, E = 2, 8, 32
    x = jax.random.normal(kx, (B, S, E), dtype=jnp.float32)
    bound = 1.0 / (E ** 0.5)
    w = jax.random.uniform(kw, (1, E), jnp.float32, -bound, bound)   # Linear(E,1).weight
    b = jax.random.uniform(kb, (1,), jnp.float32, -bound, bound)     # Linear(E,1).bias

    out = jax.block_until_ready(seq_pool(x, w, b))
    ref = seq_pool_ref(x, w, b[0])
    assert out.shape == (B, E)
    assert jnp.allclose(out, ref, atol=1e-5, rtol=1e-5), "mismatch vs reference (small)"

    # Also exercise the batched (Bt=8) + sequence-tiled online-softmax path.
    B2, S2, E2 = 8, 64, 128
    x2 = jax.random.normal(kx2, (B2, S2, E2), dtype=jnp.float32)
    bound2 = 1.0 / (E2 ** 0.5)
    w2 = jax.random.uniform(kw, (1, E2), jnp.float32, -bound2, bound2)
    b2 = jax.random.uniform(kb, (1,), jnp.float32, -bound2, bound2)
    out2 = jax.block_until_ready(seq_pool(x2, w2, b2, bt=8, st=16))
    ref2 = seq_pool_ref(x2, w2, b2[0])
    assert out2.shape == (B2, E2)
    assert jnp.allclose(out2, ref2, atol=1e-5, rtol=1e-5), "mismatch vs reference (tiled)"

    print("KERNEL_OK")
</pallas_src>

<mosaic_0001>
module attributes {stable_mosaic.version = 11 : i64} {
  func.func @seqpool_kernel(%arg0: i32, %arg1: i32, %arg2: memref<2x8x32xf32, #tpu.memory_space<vmem>>, %arg3: memref<1x32xf32, #tpu.memory_space<vmem>>, %arg4: memref<2x1x32xf32, #tpu.memory_space<vmem>>, %arg5: memref<2x1x1xf32, #tpu.memory_space<vmem>>, %arg6: memref<2x1x1xf32, #tpu.memory_space<vmem>>, %arg7: memref<2x1x32xf32, #tpu.memory_space<vmem>>) attributes {dimension_semantics = [#tpu.dimension_semantics<parallel>, #tpu.dimension_semantics<arbitrary>], iteration_bounds = array<i64: 1, 1>, scalar_prefetch = 0 : i64, scratch_operands = 3 : i64, tpu.core_type = #tpu.core_type<tc>, window_params = [{transform_indices = @transform_0, window_bounds = array<i64: 2, 8, 32>}, {pipeline_mode = #tpu.pipeline_mode<synchronous>, transform_indices = @transform_1, window_bounds = array<i64: 1, 32>}, {transform_indices = @transform_2, window_bounds = array<i64: 2, 1, 32>}]} {
    %c0_i32 = arith.constant 0 : i32
    %0 = arith.cmpi eq, %arg1, %c0_i32 : i32
    %1 = arith.extui %0 : i1 to i32
    %c0_i32_0 = arith.constant 0 : i32
    %2 = arith.cmpi ne, %1, %c0_i32_0 : i32
    scf.if %2 {
      %cst_28 = arith.constant 0xFF800000 : f32
      %34 = vector.broadcast %cst_28 : f32 to vector<2x1x1xf32>
      %c0_29 = arith.constant 0 : index
      %c0_30 = arith.constant 0 : index
      %c0_31 = arith.constant 0 : index
      %35 = vector.load %arg5[%c0_29, %c0_30, %c0_31] : memref<2x1x1xf32, #tpu.memory_space<vmem>>, vector<2x1x1xf32>
      tpu.vector_store %arg5[%c0_29, %c0_30, %c0_31], %34 {strides = array<i32>} : memref<2x1x1xf32, #tpu.memory_space<vmem>>, vector<2x1x1xf32>,
      %cst_32 = arith.constant 0.000000e+00 : f32
      %36 = vector.broadcast %cst_32 : f32 to vector<2x1x1xf32>
      %c0_33 = arith.constant 0 : index
      %c0_34 = arith.constant 0 : index
      %c0_35 = arith.constant 0 : index
      %37 = vector.load %arg6[%c0_33, %c0_34, %c0_35] : memref<2x1x1xf32, #tpu.memory_space<vmem>>, vector<2x1x1xf32>
      tpu.vector_store %arg6[%c0_33, %c0_34, %c0_35], %36 {strides = array<i32>} : memref<2x1x1xf32, #tpu.memory_space<vmem>>, vector<2x1x1xf32>,
      %cst_36 = arith.constant 0.000000e+00 : f32
      %38 = vector.broadcast %cst_36 : f32 to vector<2x1x32xf32>
      %c0_37 = arith.constant 0 : index
      %c0_38 = arith.constant 0 : index
      %c0_39 = arith.constant 0 : index
      %39 = vector.load %arg7[%c0_37, %c0_38, %c0_39] : memref<2x1x32xf32, #tpu.memory_space<vmem>>, vector<2x1x32xf32>
      tpu.vector_store %arg7[%c0_37, %c0_38, %c0_39], %38 {strides = array<i32>} : memref<2x1x32xf32, #tpu.memory_space<vmem>>, vector<2x1x32xf32>,
    } else {
    }
    %c0 = arith.constant 0 : index
    %c0_1 = arith.constant 0 : index
    %c0_2 = arith.constant 0 : index
    %3 = vector.load %arg2[%c0, %c0_1, %c0_2] : memref<2x8x32xf32, #tpu.memory_space<vmem>>, vector<2x8x32xf32>
    %c0_3 = arith.constant 0 : index
    %c0_4 = arith.constant 0 : index
    %4 = vector.load %arg3[%c0_3, %c0_4] : memref<1x32xf32, #tpu.memory_space<vmem>>, vector<1x32xf32>
    %5 = vector.shape_cast %4 : vector<1x32xf32> to vector<1x1x32xf32>
    %6 = vector.shape_cast %5 : vector<1x1x32xf32> to vector<1x1x32xf32>
    %7 = vector.broadcast %6 : vector<1x1x32xf32> to vector<2x1x32xf32>
    "tpu.trace_start"() <{level = 10 : i32, message = "bqe,bse->bqs"}> : () -> ()
    %cst = arith.constant dense<0.000000e+00> : vector<2x1x8xf32>
    %8 = tpu.matmul %7, %3, %cst {dimension_numbers = #tpu.dot_dimension_numbers<[2], [2], [1], [1], [0, 0, 0, 1, 1, 1], [0], [0]>} : vector<2x1x32xf32>, vector<2x8x32xf32>, vector<2x1x8xf32> -> vector<2x1x8xf32>
    "tpu.trace_stop"() : () -> ()
    %c0_5 = arith.constant 0 : index
    %c0_6 = arith.constant 0 : index
    %c0_7 = arith.constant 0 : index
    %9 = vector.load %arg5[%c0_5, %c0_6, %c0_7] : memref<2x1x1xf32, #tpu.memory_space<vmem>>, vector<2x1x1xf32>
    %cst_8 = arith.constant dense<0xFF800000> : vector<2x1xf32>
    %10 = vector.multi_reduction <maximumf>, %8, %cst_8 [2] : vector<2x1x8xf32> to vector<2x1xf32>
    %11 = vector.shape_cast %10 : vector<2x1xf32> to vector<2x1x1xf32>
    %12 = arith.maximumf %9, %11 : vector<2x1x1xf32>
    %13 = arith.subf %9, %12 : vector<2x1x1xf32>
    %14 = math.exp %13 : vector<2x1x1xf32>
    %15 = vector.broadcast %12 : vector<2x1x1xf32> to vector<2x1x8xf32>
    %16 = arith.subf %8, %15 : vector<2x1x8xf32>
    %17 = math.exp %16 : vector<2x1x8xf32>
    %c0_9 = arith.constant 0 : index
    %c0_10 = arith.constant 0 : index
    %c0_11 = arith.constant 0 : index
    %18 = vector.load %arg6[%c0_9, %c0_10, %c0_11] : memref<2x1x1xf32, #tpu.memory_space<vmem>>, vector<2x1x1xf32>
    %19 = arith.mulf %14, %18 : vector<2x1x1xf32>
    %cst_12 = arith.constant dense<0.000000e+00> : vector<2x1xf32>
    %20 = vector.multi_reduction <add>, %17, %cst_12 [2] : vector<2x1x8xf32> to vector<2x1xf32>
    %21 = vector.shape_cast %20 : vector<2x1xf32> to vector<2x1x1xf32>
    %22 = arith.addf %19, %21 : vector<2x1x1xf32>
    %c0_13 = arith.constant 0 : index
    %c0_14 = arith.constant 0 : index
    %c0_15 = arith.constant 0 : index
    %23 = vector.load %arg6[%c0_13, %c0_14, %c0_15] : memref<2x1x1xf32, #tpu.memory_space<vmem>>, vector<2x1x1xf32>
    tpu.vector_store %arg6[%c0_13, %c0_14, %c0_15], %22 {strides = array<i32>} : memref<2x1x1xf32, #tpu.memory_space<vmem>>, vector<2x1x1xf32>,
    %c0_16 = arith.constant 0 : index
    %c0_17 = arith.constant 0 : index
    %c0_18 = arith.constant 0 : index
    %24 = vector.load %arg7[%c0_16, %c0_17, %c0_18] : memref<2x1x32xf32, #tpu.memory_space<vmem>>, vector<2x1x32xf32>
    %25 = vector.broadcast %14 : vector<2x1x1xf32> to vector<2x1x32xf32>
    %26 = arith.mulf %25, %24 : vector<2x1x32xf32>
    "tpu.trace_start"() <{level = 10 : i32, message = "bqs,bse->bqe"}> : () -> ()
    %cst_19 = arith.constant dense<0.000000e+00> : vector<2x1x32xf32>
    %27 = tpu.matmul %17, %3, %cst_19 {dimension_numbers = #tpu.dot_dimension_numbers<[2], [1], [1], [2], [0, 0, 0, 1, 1, 2], [0], [0]>} : vector<2x1x8xf32>, vector<2x8x32xf32>, vector<2x1x32xf32> -> vector<2x1x32xf32>
    "tpu.trace_stop"() : () -> ()
    %28 = arith.addf %26, %27 : vector<2x1x32xf32>
    %c0_20 = arith.constant 0 : index
    %c0_21 = arith.constant 0 : index
    %c0_22 = arith.constant 0 : index
    %29 = vector.load %arg7[%c0_20, %c0_21, %c0_22] : memref<2x1x32xf32, #tpu.memory_space<vmem>>, vector<2x1x32xf32>
    tpu.vector_store %arg7[%c0_20, %c0_21, %c0_22], %28 {strides = array<i32>} : memref<2x1x32xf32, #tpu.memory_space<vmem>>, vector<2x1x32xf32>,
    %c0_23 = arith.constant 0 : index
    %c0_24 = arith.constant 0 : index
    %c0_25 = arith.constant 0 : index
    %30 = vector.load %arg5[%c0_23, %c0_24, %c0_25] : memref<2x1x1xf32, #tpu.memory_space<vmem>>, vector<2x1x1xf32>
    tpu.vector_store %arg5[%c0_23, %c0_24, %c0_25], %12 {strides = array<i32>} : memref<2x1x1xf32, #tpu.memory_space<vmem>>, vector<2x1x1xf32>,
    %c0_i32_26 = arith.constant 0 : i32
    %31 = arith.cmpi eq, %arg1, %c0_i32_26 : i32
    %32 = arith.extui %31 : i1 to i32
    %c0_i32_27 = arith.constant 0 : i32
    %33 = arith.cmpi ne, %32, %c0_i32_27 : i32
    scf.if %33 {
      %c0_28 = arith.constant 0 : index
      %c0_29 = arith.constant 0 : index
      %c0_30 = arith.constant 0 : index
      %34 = vector.load %arg6[%c0_28, %c0_29, %c0_30] : memref<2x1x1xf32, #tpu.memory_space<vmem>>, vector<2x1x1xf32>
      %35 = tpu.reciprocal %34 : vector<2x1x1xf32> -> vector<2x1x1xf32>
      %c0_31 = arith.constant 0 : index
      %c0_32 = arith.constant 0 : index
      %c0_33 = arith.constant 0 : index
      %36 = vector.load %arg7[%c0_31, %c0_32, %c0_33] : memref<2x1x32xf32, #tpu.memory_space<vmem>>, vector<2x1x32xf32>
      %37 = vector.broadcast %35 : vector<2x1x1xf32> to vector<2x1x32xf32>
      %38 = arith.mulf %36, %37 : vector<2x1x32xf32>
      %c0_34 = arith.constant 0 : index
      %c0_35 = arith.constant 0 : index
      %c0_36 = arith.constant 0 : index
      %39 = vector.load %arg4[%c0_34, %c0_35, %c0_36] : memref<2x1x32xf32, #tpu.memory_space<vmem>>, vector<2x1x32xf32>
      tpu.vector_store %arg4[%c0_34, %c0_35, %c0_36], %38 {strides = array<i32>} : memref<2x1x32xf32, #tpu.memory_space<vmem>>, vector<2x1x32xf32>,
    } else {
    }
    return
  }
  func.func @transform_0(%arg0: i32, %arg1: i32) -> (i32, i32, i32) {
    %c0_i32 = arith.constant 0 : i32
    %c0_i32_0 = arith.constant 0 : i32
    return %arg0, %arg1, %c0_i32 : i32, i32, i32
  }
  func.func @transform_1(%arg0: i32, %arg1: i32) -> (i32, i32) {
    %c0_i32 = arith.constant 0 : i32
    %c0_i32_0 = arith.constant 0 : i32
    %c0_i32_1 = arith.constant 0 : i32
    return %c0_i32, %c0_i32_0 : i32, i32
  }
  func.func @transform_2(%arg0: i32, %arg1: i32) -> (i32, i32, i32) {
    %c0_i32 = arith.constant 0 : i32
    %c0_i32_0 = arith.constant 0 : i32
    %c0_i32_1 = arith.constant 0 : i32
    return %arg0, %c0_i32, %c0_i32_0 : i32, i32, i32
  }
}

</mosaic_0001>

<llo_original>
// kernel: tpu_custom_call.1
$region0: #{tpu_custom_call.1}
  #allocation0 [shape = 'u32[]', space=smem, size = 0x4, offset = 0x4, fixed_abs, tag = 'smem constant byte address 0x4 - core index']
  #allocation1 [shape = 'u32[72,128]{1,0:T(1,128)}', space=vmem, size = 0x9000, scoped, tag = 'internal scratch']
  #allocation2 [shape = 'f32[2,1,1]{2,1,0:T(1,128)}', space=vmem, size = 0x400, scoped, tag = 'scratch operand']
  #allocation3 [shape = 'f32[2,1,1]{2,1,0:T(1,128)}', space=vmem, size = 0x400, scoped, tag = 'scratch operand']
  #allocation4 [shape = 'f32[2,1,32]{2,1,0:T(1,128)}', space=vmem, size = 0x400, scoped, tag = 'scratch operand']
  %s0 = inlined_call_operand.hbm [shape: f32[2,8,32], index: 0, kind: input, shape index: {}]
  %s1 = inlined_call_operand.hbm [shape: f32[1,32], index: 1, kind: input, shape index: {}]
  %s2 = inlined_call_operand.hbm [shape: f32[2,1,32], index: 2, kind: output, shape index: {}]
  %s3 = sld [smem:[#allocation0]]
  $region34: #{tpu_custom_call.1} parent=0
    _
  %s5 = ssub.s32 1, %s3
  %s6 = scalar_select 0, %s5, %s3
  $region1: #{tpu_custom_call.1} parent=0
    #allocation5 [shape = 'u8[8192]{0}', space=vmem, size = 0x2000, scoped, tag = 'input window, operand 0, single buffered']
    #allocation6 [shape = 's32[1]{0}', space=sflag, size = 0x4, scoped, tag = 'scoped memory for tpu_custom_call.1']
    #allocation7 [shape = 's32[1]{0}', space=sflag, size = 0x4, scoped, tag = 'scoped memory for tpu_custom_call.1']
    #allocation8 [shape = 'u8[512]{0}', space=vmem, size = 0x400, scoped, tag = 'input window, operand 1, single buffered']
    #allocation9 [shape = 's32[1]{0}', space=sflag, size = 0x4, scoped, tag = 'scoped memory for tpu_custom_call.1']
    #allocation10 [shape = 'u8[1024]{0}', space=vmem, size = 0x400, scoped, tag = 'output window, operand 0, single buffered']
    %7 = vsyncpa [#allocation6], 0
    %8 = vsyncpa [#allocation9], 0
    %9 = vsyncpa [#allocation7], 0
    // Predicated region
    $region2: #{tpu_custom_call.1} parent=1 // pred_check
      _
    $region3: #{tpu_custom_call.1} parent=1 // pred_check_branch
      %11 = sbr.rel (0) target = $region5
    $region4: #{tpu_custom_call.1} parent=1 // pred_region
      %13 = vsyncadd [#allocation6], 0
      %s14 = sshll.u32 %s0, 4
      %s15 = int_to_ptr.hbm [resolvable:$true] %s14
      %s16 = sshll.u32 [#allocation5], 4
      %s17 = int_to_ptr.vmem [resolvable:$true] %s16
      %22 = dma.hbm_to_vmem [thread:$0]  %s15, 256, %s17, [#allocation6], 128, 128, 8
    $region5: #{tpu_custom_call.1} parent=1 // pred_fallthru
      _
    // Predicated region
    $region6: #{tpu_custom_call.1} parent=1 // pred_check
      _
    $region7: #{tpu_custom_call.1} parent=1 // pred_check_branch
      %24 = sbr.rel (0) target = $region9
    $region8: #{tpu_custom_call.1} parent=1 // pred_region
      %26 = vsyncadd [#allocation9], 0
      %s28 = sshll.u32 %s1, 4
      %s29 = int_to_ptr.hbm [resolvable:$true] %s28
      %s30 = sshll.u32 [#allocation8], 4
      %s31 = int_to_ptr.vmem [resolvable:$true] %s30
      %33 = dma.hbm_to_vmem [thread:$0]  %s29, 16, %s31, [#allocation9]
    $region9: #{tpu_custom_call.1} parent=1 // pred_fallthru
      _
    // Predicated region
    $region10: #{tpu_custom_call.1} parent=1 // pred_check
      _
    $region11: #{tpu_custom_call.1} parent=1 // pred_check_branch
      %35 = sbr.rel (0) target = $region13
    $region12: #{tpu_custom_call.1} parent=1 // pred_region
      %37 = dma.done [#allocation6], 256
    $region13: #{tpu_custom_call.1} parent=1 // pred_fallthru
      _
    // Predicated region
    $region14: #{tpu_custom_call.1} parent=1 // pred_check
      _
    $region15: #{tpu_custom_call.1} parent=1 // pred_check_branch
      %39 = sbr.rel (0) target = $region17
    $region16: #{tpu_custom_call.1} parent=1 // pred_region
      %41 = dma.done [#allocation9], 16
    $region17: #{tpu_custom_call.1} parent=1 // pred_fallthru
      _
    %p42 = scmp.eq.s32.totalorder 0, 0
    // Predicated region
    $region18: #{tpu_custom_call.1} parent=1 // pred_check
      %p43 = pneg %p42
    $region19: #{tpu_custom_call.1} parent=1 // pred_check_branch
      %45 = sbr.rel (%p43) target = $region21
    $region20: #{tpu_custom_call.1} parent=1 // pred_region
      %vm46 = vcmask 0
      %47 = vst.msk [vmem:[#allocation2] sm:$0x1] %vm46, -inf
      %48 = vst.msk [vmem:[#allocation2 + $0x1] sm:$0x1] %vm46, -inf
      %49 = vst.msk [vmem:[#allocation3] sm:$0x1] %vm46, 0.0
      %50 = vst.msk [vmem:[#allocation3 + $0x1] sm:$0x1] %vm46, 0.0
      %vm51 = vcmask 253952
      %52 = vst.msk [vmem:[#allocation4] sm:$0x1] %vm51, 0.0
      %53 = vst.msk [vmem:[#allocation4 + $0x1] sm:$0x1] %vm51, 0.0
    $region21: #{tpu_custom_call.1} parent=1 // pred_fallthru
      _
    %v54 = vld [vmem:[#allocation5] sm:$0xff]
    %v55 = vld [vmem:[#allocation5 + $0x8] sm:$0xff]
    %v56 = vld [vmem:[#allocation8] sm:$0x1]
    %vm57 = vcmask 261120
    %v59 = vsel %vm57, %v56, 0
    %v62 = vsel %vm57, %v54, 0
    %64 = vmatpush.xpose.msra.mxu0 0.0
    %65 = vmatpush.xpose.msra.mxu0 0.0
    %66 = vmatpush.xpose.msra.mxu0 0.0
    %67 = vmatpush.xpose.msra.mxu0 0.0
    %68 = vmatpush.xpose.msra.mxu0 0.0
    %69 = vmatpush.xpose.msra.mxu0 0.0
    %70 = vmatpush.xpose.msra.mxu0 0.0
    %71 = vmatpush.xpose.msra.mxu0 0.0
    %72 = vmatpush.xpose.msra.mxu0 0.0
    %73 = vmatpush.xpose.msra.mxu0 0.0
    %74 = vmatpush.xpose.msra.mxu0 0.0
    %75 = vmatpush.xpose.msra.mxu0 0.0
    %76 = vmatpush.xpose.msra.mxu0 0.0
    %77 = vmatpush.xpose.msra.mxu0 0.0
    %78 = vmatpush.xpose.msra.mxu0 0.0
    %79 = vmatpush.xpose.msra.mxu0 %v62
    %80 = vmatmul.f32.gmra.mxu0 %v59
    %v81 = vpop.f32.mrf.mxu0
    %v82 = vadd.f32 0.0, %v81
    %83 = vdwg.mxu0
    %v85 = vsel %vm57, %v55, 0
    %87 = vmatpush.xpose.msra.mxu0 0.0
    %88 = vmatpush.xpose.msra.mxu0 0.0
    %89 = vmatpush.xpose.msra.mxu0 0.0
    %90 = vmatpush.xpose.msra.mxu0 0.0
    %91 = vmatpush.xpose.msra.mxu0 0.0
    %92 = vmatpush.xpose.msra.mxu0 0.0
    %93 = vmatpush.xpose.msra.mxu0 0.0
    %94 = vmatpush.xpose.msra.mxu0 0.0
    %95 = vmatpush.xpose.msra.mxu0 0.0
    %96 = vmatpush.xpose.msra.mxu0 0.0
    %97 = vmatpush.xpose.msra.mxu0 0.0
    %98 = vmatpush.xpose.msra.mxu0 0.0
    %99 = vmatpush.xpose.msra.mxu0 0.0
    %100 = vmatpush.xpose.msra.mxu0 0.0
    %101 = vmatpush.xpose.msra.mxu0 0.0
    %102 = vmatpush.xpose.msra.mxu0 %v85
    %103 = vmatmul.f32.gmra.mxu0 %v59
    %v104 = vpop.f32.mrf.mxu0
    %v105 = vadd.f32 0.0, %v104
    %106 = vdwg.mxu0
    %v107 = vld [vmem:[#allocation2] sm:$0x1]
    %v108 = vld [vmem:[#allocation2 + $0x1] sm:$0x1]
    %vm109 = vcmask 57344
    %v110 = vsel %vm109, %v82, -inf
    %111 = vmax.xlane.f32.xlu0 %v110
    %v112 = vpop.xlane.xlu0 %111
    %v113 = vsel %vm109, %v105, -inf
    %114 = vmax.xlane.f32.xlu0 %v113
    %v115 = vpop.xlane.xlu0 %114
    %v116 = vmax.f32 %v107, %v112
    %v117 = vmax.f32 %v108, %v115
    %v118 = vsub.f32 %v107, %v116
    %v119 = vsub.f32 %v108, %v117
    %v120 = vmul.f32 %v118, 1.442695
    %v121 = vpow.pop %v120
    %v122 = vmul.f32 %v119, 1.442695
    %v123 = vpow.pop %v122
    %125 = vset.pattern.permute.xlu0 0
    %126 = vperm.xlu0 %125, %v116
    %v127 = vpop.permute.xlu0 %126
    %v129 = vperm.slane %v127, 0
    %131 = vset.pattern.permute.xlu0 0
    %132 = vperm.xlu0 %131, %v117
    %v133 = vpop.permute.xlu0 %132
    %v135 = vperm.slane %v133, 0
    %v136 = vsub.f32 %v82, %v129
    %v137 = vsub.f32 %v105, %v135
    %v138 = vmul.f32 %v136, 1.442695
    %v139 = vpow.pop %v138
    %v140 = vmul.f32 %v137, 1.442695
    %v141 = vpow.pop %v140
    %v142 = vld [vmem:[#allocation3] sm:$0x1]
    %v143 = vld [vmem:[#allocation3 + $0x1] sm:$0x1]
    %v144 = vmul.f32 %v121, %v142
    %v145 = vmul.f32 %v123, %v143
    %v146 = vsel %vm109, %v139, 0.0
    %147 = vadd.xlane.f32.xlu0 %v146
    %v148 = vpop.xlane.xlu0 %147
    %v149 = vsel %vm109, %v141, 0.0
    %150 = vadd.xlane.f32.xlu0 %v149
    %v151 = vpop.xlane.xlu0 %150
    %v152 = vadd.f32 %v144, %v148
    %v153 = vadd.f32 %v145, %v151
    %vm154 = vcmask 0
    %155 = vst.msk [vmem:[#allocation3] sm:$0x1] %vm154, %v152
    %156 = vst.msk [vmem:[#allocation3 + $0x1] sm:$0x1] %vm154, %v153
    %v157 = vld [vmem:[#allocation4] sm:$0x1]
    %v158 = vld [vmem:[#allocation4 + $0x1] sm:$0x1]
    %160 = vset.pattern.permute.xlu0 0
    %161 = vperm.xlu0 %160, %v121
    %v162 = vpop.permute.xlu0 %161
    %v164 = vperm.slane %v162, 0
    %166 = vset.pattern.permute.xlu0 0
    %167 = vperm.xlu0 %166, %v123
    %v168 = vpop.permute.xlu0 %167
    %v170 = vperm.slane %v168, 0
    %v171 = vmul.f32 %v164, %v157
    %v172 = vmul.f32 %v170, %v158
    %vm173 = vcmask 64512
    %v175 = vsel %vm173, %v139, 0
    %177 = vmatpush.msra.mxu0 0.0
    %178 = vmatpush.msra.mxu0 0.0
    %179 = vmatpush.msra.mxu0 0.0
    %180 = vmatpush.msra.mxu0 0.0
    %181 = vmatpush.msra.mxu0 0.0
    %182 = vmatpush.msra.mxu0 0.0
    %183 = vmatpush.msra.mxu0 0.0
    %184 = vmatpush.msra.mxu0 0.0
    %185 = vmatpush.msra.mxu0 0.0
    %186 = vmatpush.msra.mxu0 0.0
    %187 = vmatpush.msra.mxu0 0.0
    %188 = vmatpush.msra.mxu0 0.0
    %189 = vmatpush.msra.mxu0 0.0
    %190 = vmatpush.msra.mxu0 0.0
    %191 = vmatpush.msra.mxu0 0.0
    %192 = vmatpush.msra.mxu0 %v54
    %193 = vmatmul.f32.gmra.mxu0 %v175
    %v194 = vpop.f32.mrf.mxu0
    %v195 = vadd.f32 0.0, %v194
    %196 = vdwg.mxu0
    %v198 = vsel %vm173, %v141, 0
    %200 = vmatpush.msra.mxu0 0.0
    %201 = vmatpush.msra.mxu0 0.0
    %202 = vmatpush.msra.mxu0 0.0
    %203 = vmatpush.msra.mxu0 0.0
    %204 = vmatpush.msra.mxu0 0.0
    %205 = vmatpush.msra.mxu0 0.0
    %206 = vmatpush.msra.mxu0 0.0
    %207 = vmatpush.msra.mxu0 0.0
    %208 = vmatpush.msra.mxu0 0.0
    %209 = vmatpush.msra.mxu0 0.0
    %210 = vmatpush.msra.mxu0 0.0
    %211 = vmatpush.msra.mxu0 0.0
    %212 = vmatpush.msra.mxu0 0.0
    %213 = vmatpush.msra.mxu0 0.0
    %214 = vmatpush.msra.mxu0 0.0
    %215 = vmatpush.msra.mxu0 %v55
    %216 = vmatmul.f32.gmra.mxu0 %v198
    %v217 = vpop.f32.mrf.mxu0
    %v218 = vadd.f32 0.0, %v217
    %219 = vdwg.mxu0
    %v220 = vadd.f32 %v171, %v195
    %v221 = vadd.f32 %v172, %v218
    %vm222 = vcmask 253952
    %223 = vst.msk [vmem:[#allocation4] sm:$0x1] %vm222, %v220
    %224 = vst.msk [vmem:[#allocation4 + $0x1] sm:$0x1] %vm222, %v221
    %225 = vst.msk [vmem:[#allocation2] sm:$0x1] %vm154, %v116
    %226 = vst.msk [vmem:[#allocation2 + $0x1] sm:$0x1] %vm154, %v117
    // Predicated region
    $region22: #{tpu_custom_call.1} parent=1 // pred_check
      %p227 = pneg %p42
    $region23: #{tpu_custom_call.1} parent=1 // pred_check_branch
      %229 = sbr.rel (%p227) target = $region25
    $region24: #{tpu_custom_call.1} parent=1 // pred_region
      %v230 = vld [vmem:[#allocation3] sm:$0x1]
      %v231 = vld [vmem:[#allocation3 + $0x1] sm:$0x1]
      %v232 = vrcp.pop %v230
      %v233 = vmul.f32 %v230, %v232
      %v234 = vsub.f32 1.0, %v233
      %v235 = vmul.f32 %v232, %v234
      %v236 = vadd.f32 %v232, %v235
      %vm237 = vweird.f32 %v230
      %vm238 = vweird.f32 %v232
      %vm239 = vmor %vm237, %vm238
      %v240 = vsel %vm239, %v232, %v236
      %v241 = vand.u32 2147483647, %v230
      %vm242 = vcmp.eq.f32.partialorder %v241, 8.507059e+37
      %v243 = vand.u32 %v230, 2147483648
      %v244 = vor.u32 1.1754944e-38, %v243
      %v245 = vsel %vm242, %v244, %v240
      %v246 = vrcp.pop %v231
      %v247 = vmul.f32 %v231, %v246
      %v248 = vsub.f32 1.0, %v247
      %v249 = vmul.f32 %v246, %v248
      %v250 = vadd.f32 %v246, %v249
      %vm251 = vweird.f32 %v231
      %vm252 = vweird.f32 %v246
      %vm253 = vmor %vm251, %vm252
      %v254 = vsel %vm253, %v246, %v250
      %v255 = vand.u32 2147483647, %v231
      %vm256 = vcmp.eq.f32.partialorder %v255, 8.507059e+37
      %v257 = vand.u32 %v231, 2147483648
      %v258 = vor.u32 1.1754944e-38, %v257
      %v259 = vsel %vm256, %v258, %v254
      %v260 = vld [vmem:[#allocation4] sm:$0x1]
      %v261 = vld [vmem:[#allocation4 + $0x1] sm:$0x1]
      %263 = vset.pattern.permute.xlu0 0
      %264 = vperm.xlu0 %263, %v245
      %v265 = vpop.permute.xlu0 %264
      %v267 = vperm.slane %v265, 0
      %269 = vset.pattern.permute.xlu0 0
      %270 = vperm.xlu0 %269, %v259
      %v271 = vpop.permute.xlu0 %270
      %v273 = vperm.slane %v271, 0
      %v274 = vmul.f32 %v260, %v267
      %v275 = vmul.f32 %v261, %v273
      %276 = vst.msk [vmem:[#allocation10] sm:$0x1] %vm222, %v274
      %277 = vst.msk [vmem:[#allocation10 + $0x1] sm:$0x1] %vm222, %v275
    $region25: #{tpu_custom_call.1} parent=1 // pred_fallthru
      _
    // Predicated region
    $region26: #{tpu_custom_call.1} parent=1 // pred_check
      _
    $region27: #{tpu_custom_call.1} parent=1 // pred_check_branch
      %279 = sbr.rel (0) target = $region29
    $region28: #{tpu_custom_call.1} parent=1 // pred_region
      %281 = vsyncadd [#allocation7], 0
      %s282 = sshll.u32 [#allocation10], 4
      %s283 = int_to_ptr.vmem [resolvable:$true] %s282
      %s284 = sshll.u32 %s2, 4
      %s285 = int_to_ptr.hbm [resolvable:$true] %s284
      %290 = dma.vmem_to_hbm [thread:$0]  %s283, 32, %s285, [#allocation7], 16, 16, 1
    $region29: #{tpu_custom_call.1} parent=1 // pred_fallthru
      _
    // Predicated region
    $region30: #{tpu_custom_call.1} parent=1 // pred_check
      _
    $region31: #{tpu_custom_call.1} parent=1 // pred_check_branch
      %292 = sbr.rel (0) target = $region33
    $region32: #{tpu_custom_call.1} parent=1 // pred_region
      %294 = dma.done [#allocation7], 32
    $region33: #{tpu_custom_call.1} parent=1 // pred_fallthru
      _
    %295 = vsyncpa [#allocation6], 1
    %296 = vsyncpa [#allocation9], 1
    %297 = vsyncpa [#allocation7], 1

</llo_original>
